<compile_context>
chip_gen: v7x
topology: tpu7x:2x2x1
jax: 0.10.0
libtpu: 0.0.40
codegen_flags: <defaults>
</compile_context>

<pallas_src>
import jax
import jax.numpy as jnp
from jax import lax
from jax.experimental import pallas as pl
from jax.experimental.pallas import tpu as pltpu

# SELU constants (match torch.nn.SELU)
_SELU_ALPHA = 1.6732632423543772848170429916717
_SELU_SCALE = 1.0507009873554804934193349852946

_LANE = 128


def _selu(x):
    return _SELU_SCALE * jnp.where(x > 0, x, _SELU_ALPHA * (jnp.exp(x) - 1.0))


def _round_up(n, m):
    return ((n + m - 1) // m) * m


def _default_compute_dtype():
    """bf16 matmul operands on v6e/v7x; f32 on v5e and older generations."""
    try:
        kind = jax.devices()[0].device_kind.lower()
    except Exception:
        return jnp.float32
    if any(tag in kind for tag in ("v2", "v3", "v4", "v5")):
        return jnp.float32
    return jnp.bfloat16


def _pick_batch_tile(batch, block_b):
    """Batch tile: multiple of 128 (packed output / unmasked stores), capped
    at the padded batch, and split so the grid has >=2 steps whenever the
    batch spans >=2 lane tiles (v7x megacore sharding)."""
    b128 = _round_up(batch, _LANE)
    tb = max(_LANE, min(_round_up(block_b, _LANE), b128))
    if b128 // tb < 2 and b128 >= 2 * _LANE:
        tb = _round_up(b128 // 2, _LANE)
    return tb


def _critic_kernel(s_ref, a_ref, w1s_ref, w1a_ref, b1_ref, w2_ref, b2_ref,
                   w3_ref, b3_ref, q_ref):
    e = pl.program_id(1)                 # ensemble member (inner grid axis)

    # layer 1:  cat(states, actions) @ w1  ==  states @ w1_s + actions @ w1_a
    h1 = jnp.dot(s_ref[...], w1s_ref[0], preferred_element_type=jnp.float32)
    h1 = h1 + jnp.dot(a_ref[...], w1a_ref[0],
                      preferred_element_type=jnp.float32)
    h1 = _selu(h1 + b1_ref[0])                        # f32 bias + SELU

    # layer 2
    h2 = jnp.dot(h1.astype(w2_ref.dtype), w2_ref[0],
                 preferred_element_type=jnp.float32)
    h2 = _selu(h2 + b2_ref[0])

    # layer 3 (output width 1): VPU multiply + XLU lane reduction, no MXU.
    q_col = jnp.sum(h2 * w3_ref[0], axis=-1, keepdims=True) + b3_ref[e]  # (tb,1)

    # Packed, lane-dense output: q for tile row i*128+c lands at
    # q_ref[0, 0, i, c].  Relayout (tb,1)->(tb//128,128) via identity-mask
    # multiply + sublane reduce per 128-row block (2-D ops only).
    tb = q_col.shape[0]
    rr = lax.broadcasted_iota(jnp.int32, (_LANE, _LANE), 0)
    cc = lax.broadcasted_iota(jnp.int32, (_LANE, _LANE), 1)
    eye = (rr == cc).astype(jnp.float32)
    for i in range(tb // _LANE):                       # static unroll, <=16
        qb = q_col[i * _LANE:(i + 1) * _LANE, :]       # (128, 1)
        q_ref[0, 0, i:i + 1, :] = jnp.sum(
            qb * eye, axis=0, keepdims=True).astype(q_ref.dtype)


def prepare_critic_params(params, state_size, compute_dtype=None):
    """One-time prep for a single critic: split w1 by (states, actions),
    zero-pad the hidden dim to a multiple of 128, cast MXU operands.

    `params` uses PyTorch-Linear layout transposed to [in, out].  Biases, the
    w3 row vector and b3 stay float32 (VPU / scalar path)."""
    if compute_dtype is None:
        compute_dtype = _default_compute_dtype()
    w1, b1, w2, b2, w3, b3 = params
    hidden = w1.shape[1]
    pad = _round_up(hidden, _LANE) - hidden

    w1 = jnp.pad(w1, ((0, 0), (0, pad)))
    b1 = jnp.pad(b1, ((0, 0), (0, pad)))
    w2 = jnp.pad(w2, ((0, pad), (0, pad)))
    b2 = jnp.pad(b2, ((0, 0), (0, pad)))
    w3_row = jnp.pad(w3.T, ((0, 0), (0, pad)))          # [1, Hp]

    w1_s = w1[:state_size, :].astype(compute_dtype)
    w1_a = w1[state_size:, :].astype(compute_dtype)
    return (w1_s, w1_a,
            b1.astype(jnp.float32),
            w2.astype(compute_dtype),
            b2.astype(jnp.float32),
            w3_row.astype(jnp.float32),
            b3.reshape(-1).astype(jnp.float32))          # (1,) for SMEM


def stack_critic_params(prepared_params_list):
    """Stack N prepared critics along a new leading ensemble axis."""
    stacked = jax.tree_util.tree_map(lambda *xs: jnp.stack(xs, axis=0),
                                     *prepared_params_list)
    w1_s, w1_a, b1, w2, b2, w3, b3 = stacked
    return (w1_s, w1_a, b1, w2, b2, w3, b3.reshape(-1))  # b3: (N,)


def critic_ensemble_forward(states, actions, ens_params, *, block_b=2048):
    """states: [B,S], actions: [B,A], ens_params: stacked over N critics.
    Returns q: [N, B, 1] float32."""
    w1_s, w1_a, b1, w2, b2, w3, b3 = ens_params
    N, S, Hp = w1_s.shape
    A = w1_a.shape[1]
    B = states.shape[0]
    assert states.shape[1] == S and actions.shape[1] == A
    cdt = w1_s.dtype

    tb = _pick_batch_tile(B, block_b)
    b_pad = _round_up(B, tb)
    nt = b_pad // tb
    nrows = tb // _LANE

    states = states.astype(cdt)
    actions = actions.astype(cdt)
    if b_pad != B:
        states = jnp.pad(states, ((0, b_pad - B), (0, 0)))
        actions = jnp.pad(actions, ((0, b_pad - B), (0, 0)))

    batch_map = lambda i, e: (i, 0)      # activations: reused across critics
    weight_map = lambda i, e: (e, 0, 0)  # weights: selected by ensemble index

    out = pl.pallas_call(
        _critic_kernel,
        out_shape=jax.ShapeDtypeStruct((N, nt, nrows, _LANE), jnp.float32),
        # batch tiles outer, critics inner: the activation tile is DMA'd once
        # per batch tile and reused across all N critics.
        grid=(nt, N),
        in_specs=[
            pl.BlockSpec((tb, S), batch_map),             # states tile
            pl.BlockSpec((tb, A), batch_map),             # actions tile
            pl.BlockSpec((1, S, Hp), weight_map),         # w1_s[e]
            pl.BlockSpec((1, A, Hp), weight_map),         # w1_a[e]
            pl.BlockSpec((1, 1, Hp), weight_map),         # b1[e]
            pl.BlockSpec((1, Hp, Hp), weight_map),        # w2[e]
            pl.BlockSpec((1, 1, Hp), weight_map),         # b2[e]
            pl.BlockSpec((1, 1, Hp), weight_map),         # w3 row[e]
            pl.BlockSpec(memory_space=pltpu.MemorySpace.SMEM),  # b3 scalars (N,)
        ],
        out_specs=pl.BlockSpec((1, 1, nrows, _LANE), lambda i, e: (e, i, 0, 0)),
        compiler_params=pltpu.CompilerParams(
            dimension_semantics=("parallel", "parallel"),
            # VMEM budget per step (double-buffered): activations
            # 2*tb*(S+A)*|cdt| + weights 2*(S+A+Hp+3)*Hp*|cdt| + packed out
            # 2*tb*4/128*128 + f32 intermediates ~2*tb*Hp*4  ->  ~4 MiB at
            # tb=2048, Hp=128.  32 MiB leaves ample headroom and stays well
            # inside v7x's 64 MiB physical VMEM.
            vmem_limit_bytes=32 * 1024 * 1024,
        ),
    )(states, actions, w1_s, w1_a, b1, w2, b2, w3, b3)

    q = out.reshape(N, b_pad)[:, :B]
    return q[..., None]                                   # (N, B, 1)


def critic_forward(states, actions, kernel_params, *, block_b=2048):
    """Single-critic forward: states [B,S], actions [B,A] -> q [B,1] f32."""
    ens = stack_critic_params([kernel_params])
    return critic_ensemble_forward(states, actions, ens, block_b=block_b)[0]


def init_critic_params(key, state_size, action_size, hidden_size):
    """Deterministic synthetic parameters (PyTorch Linear shapes, transposed)."""
    in_dim = state_size + action_size
    k = jax.random.split(key, 6)

    def uniform(kk, shape, fan_in):
        bound = 1.0 / jnp.sqrt(jnp.asarray(fan_in, jnp.float32))
        return jax.random.uniform(kk, shape, jnp.float32, -bound, bound)

    # stored as [in, out] so forward computes x @ W + b
    w1 = uniform(k[0], (in_dim, hidden_size), in_dim)
    b1 = uniform(k[1], (1, hidden_size), in_dim)
    w2 = uniform(k[2], (hidden_size, hidden_size), hidden_size)
    b2 = uniform(k[3], (1, hidden_size), hidden_size)
    w3 = uniform(k[4], (hidden_size, 1), hidden_size)
    b3 = uniform(k[5], (1, 1), hidden_size)
    return (w1, b1, w2, b2, w3, b3)


def critic_forward_ref(states, actions, params):
    """Pure-JAX reference (unpadded, concat-based) for correctness checking."""
    x = jnp.concatenate([states, actions], axis=1).astype(jnp.float32)
    w1, b1, w2, b2, w3, b3 = params
    h1 = _selu(x @ w1 + b1)
    h2 = _selu(h1 @ w2 + b2)
    return h2 @ w3 + b3


def critic_ensemble_forward_ref(states, actions, params_list):
    return jnp.stack([critic_forward_ref(states, actions, p)
                      for p in params_list], axis=0)


if __name__ == "__main__":
    key = jax.random.PRNGKey(0)
    k_s, k_a, k_p = jax.random.split(key, 3)

    batch = 8
    state_size = 24
    action_size = 8
    hidden_size = 32

    states = jax.random.normal(k_s, (batch, state_size), jnp.float32)
    actions = jax.random.normal(k_a, (batch, action_size), jnp.float32)
    params = init_critic_params(k_p, state_size, action_size, hidden_size)
    q_ref_small = critic_forward_ref(states, actions, params)

    # f32 path (v5e-safe), single grid step, packed output.
    kp_f32 = prepare_critic_params(params, state_size, jnp.float32)
    q = critic_forward(states, actions, kp_f32)
    jax.block_until_ready(q)
    assert q.shape == (batch, 1)
    assert jnp.allclose(q, q_ref_small, atol=1e-5, rtol=1e-5), "f32 mismatch vs ref"

    # larger batch: batch padding + auto tile split (>=2 grid steps for v7x).
    kb_s, kb_a = jax.random.split(jax.random.PRNGKey(1))
    big_b = 300
    big_states = jax.random.normal(kb_s, (big_b, state_size), jnp.float32)
    big_actions = jax.random.normal(kb_a, (big_b, action_size), jnp.float32)
    q_big_ref = critic_forward_ref(big_states, big_actions, params)

    q_big = critic_forward(big_states, big_actions, kp_f32)   # default block_b
    jax.block_until_ready(q_big)
    assert q_big.shape == (big_b, 1)
    assert jnp.allclose(q_big, q_big_ref, atol=1e-4, rtol=1e-4), \
        "f32 auto-tile mismatch vs ref"

    q_big2 = critic_forward(big_states, big_actions, kp_f32, block_b=128)
    jax.block_until_ready(q_big2)
    assert jnp.allclose(q_big2, q_big_ref, atol=1e-4, rtol=1e-4), \
        "f32 multi-step grid mismatch vs ref"

    # REDQ ensemble: N critics evaluated in a single pallas_call.
    n_critics = 3
    ens_raw = [init_critic_params(jax.random.PRNGKey(100 + i), state_size,
                                  action_size, hidden_size)
               for i in range(n_critics)]
    ens_prepared = stack_critic_params(
        [prepare_critic_params(p, state_size, jnp.float32) for p in ens_raw])
    eb_s, eb_a = jax.random.split(jax.random.PRNGKey(2))
    ens_b = 64
    ens_states = jax.random.normal(eb_s, (ens_b, state_size), jnp.float32)
    ens_actions = jax.random.normal(eb_a, (ens_b, action_size), jnp.float32)
    q_ens = critic_ensemble_forward(ens_states, ens_actions, ens_prepared)
    jax.block_until_ready(q_ens)
    q_ens_ref = critic_ensemble_forward_ref(ens_states, ens_actions, ens_raw)
    assert q_ens.shape == (n_critics, ens_b, 1)
    assert jnp.allclose(q_ens, q_ens_ref, atol=1e-4, rtol=1e-4), \
        "ensemble mismatch vs ref"

    # bf16 MXU operands (v6e/v7x default); bias add / SELU / accum stay f32.
    kp_bf16 = prepare_critic_params(params, state_size, jnp.bfloat16)
    q_bf16 = critic_forward(states, actions, kp_bf16)
    jax.block_until_ready(q_bf16)
    assert jnp.allclose(q_bf16, q_ref_small, atol=5e-2, rtol=5e-2), \
        "bf16 mismatch vs ref"

    print("KERNEL_OK")
</pallas_src>

<mosaic_0001>
module attributes {stable_mosaic.version = 11 : i64} {
  func.func @_critic_kernel(%arg0: i32, %arg1: i32, %arg2: memref<128x24xf32, #tpu.memory_space<vmem>>, %arg3: memref<128x8xf32, #tpu.memory_space<vmem>>, %arg4: memref<1x24x128xf32, #tpu.memory_space<vmem>>, %arg5: memref<1x8x128xf32, #tpu.memory_space<vmem>>, %arg6: memref<1x1x128xf32, #tpu.memory_space<vmem>>, %arg7: memref<1x128x128xf32, #tpu.memory_space<vmem>>, %arg8: memref<1x1x128xf32, #tpu.memory_space<vmem>>, %arg9: memref<1x1x128xf32, #tpu.memory_space<vmem>>, %arg10: memref<1xf32, #tpu.memory_space<smem>>, %arg11: memref<1x1x1x128xf32, #tpu.memory_space<vmem>>) attributes {dimension_semantics = [#tpu.dimension_semantics<parallel>, #tpu.dimension_semantics<parallel>], iteration_bounds = array<i64: 1, 1>, scalar_prefetch = 0 : i64, scratch_operands = 0 : i64, tpu.core_type = #tpu.core_type<tc>, window_params = [{transform_indices = @transform_0, window_bounds = array<i64: 128, 24>}, {transform_indices = @transform_1, window_bounds = array<i64: 128, 8>}, {transform_indices = @transform_2, window_bounds = array<i64: 1, 24, 128>}, {transform_indices = @transform_3, window_bounds = array<i64: 1, 8, 128>}, {transform_indices = @transform_4, window_bounds = array<i64: 1, 1, 128>}, {transform_indices = @transform_5, window_bounds = array<i64: 1, 128, 128>}, {transform_indices = @transform_6, window_bounds = array<i64: 1, 1, 128>}, {transform_indices = @transform_7, window_bounds = array<i64: 1, 1, 128>}, {transform_indices = @transform_8, window_bounds = array<i64: 1>}, {transform_indices = @transform_9, window_bounds = array<i64: 1, 1, 1, 128>}]} {
    %c0 = arith.constant 0 : index
    %c0_0 = arith.constant 0 : index
    %0 = vector.load %arg2[%c0, %c0_0] : memref<128x24xf32, #tpu.memory_space<vmem>>, vector<128x24xf32>
    %c0_1 = arith.constant 0 : index
    %c0_2 = arith.constant 0 : index
    %c0_3 = arith.constant 0 : index
    %1 = vector.load %arg4[%c0_1, %c0_2, %c0_3] : memref<1x24x128xf32, #tpu.memory_space<vmem>>, vector<1x24x128xf32>
    %2 = vector.shape_cast %1 : vector<1x24x128xf32> to vector<24x128xf32>
    %cst = arith.constant dense<0.000000e+00> : vector<128x128xf32>
    %3 = tpu.matmul %0, %2, %cst {dimension_numbers = #tpu.dot_dimension_numbers<[1], [0], [0], [1], [0, 0, 1, 1], [], []>} : vector<128x24xf32>, vector<24x128xf32>, vector<128x128xf32> -> vector<128x128xf32>
    %c0_4 = arith.constant 0 : index
    %c0_5 = arith.constant 0 : index
    %4 = vector.load %arg3[%c0_4, %c0_5] : memref<128x8xf32, #tpu.memory_space<vmem>>, vector<128x8xf32>
    %c0_6 = arith.constant 0 : index
    %c0_7 = arith.constant 0 : index
    %c0_8 = arith.constant 0 : index
    %5 = vector.load %arg5[%c0_6, %c0_7, %c0_8] : memref<1x8x128xf32, #tpu.memory_space<vmem>>, vector<1x8x128xf32>
    %6 = vector.shape_cast %5 : vector<1x8x128xf32> to vector<8x128xf32>
    %cst_9 = arith.constant dense<0.000000e+00> : vector<128x128xf32>
    %7 = tpu.matmul %4, %6, %cst_9 {dimension_numbers = #tpu.dot_dimension_numbers<[1], [0], [0], [1], [0, 0, 1, 1], [], []>} : vector<128x8xf32>, vector<8x128xf32>, vector<128x128xf32> -> vector<128x128xf32>
    %8 = arith.addf %3, %7 : vector<128x128xf32>
    %c0_10 = arith.constant 0 : index
    %c0_11 = arith.constant 0 : index
    %c0_12 = arith.constant 0 : index
    %9 = vector.load %arg6[%c0_10, %c0_11, %c0_12] : memref<1x1x128xf32, #tpu.memory_space<vmem>>, vector<1x1x128xf32>
    %10 = vector.shape_cast %9 : vector<1x1x128xf32> to vector<1x128xf32>
    %11 = vector.broadcast %10 : vector<1x128xf32> to vector<128x128xf32>
    %12 = arith.addf %8, %11 : vector<128x128xf32>
    %cst_13 = arith.constant 0.000000e+00 : f32
    %13 = vector.broadcast %cst_13 : f32 to vector<128x128xf32>
    %14 = arith.cmpf ogt, %12, %13 : vector<128x128xf32>
    %15 = math.exp %12 : vector<128x128xf32>
    %cst_14 = arith.constant 1.000000e+00 : f32
    %16 = vector.broadcast %cst_14 : f32 to vector<128x128xf32>
    %17 = arith.subf %15, %16 : vector<128x128xf32>
    %cst_15 = arith.constant 1.67326319 : f32
    %18 = vector.broadcast %cst_15 : f32 to vector<128x128xf32>
    %19 = arith.mulf %18, %17 : vector<128x128xf32>
    %20 = arith.select %14, %12, %19 : vector<128x128xi1>, vector<128x128xf32>
    %cst_16 = arith.constant 1.05070102 : f32
    %21 = vector.broadcast %cst_16 : f32 to vector<128x128xf32>
    %22 = arith.mulf %21, %20 : vector<128x128xf32>
    %c0_17 = arith.constant 0 : index
    %c0_18 = arith.constant 0 : index
    %c0_19 = arith.constant 0 : index
    %23 = vector.load %arg7[%c0_17, %c0_18, %c0_19] : memref<1x128x128xf32, #tpu.memory_space<vmem>>, vector<1x128x128xf32>
    %24 = vector.shape_cast %23 : vector<1x128x128xf32> to vector<128x128xf32>
    %cst_20 = arith.constant dense<0.000000e+00> : vector<128x128xf32>
    %25 = tpu.matmul %22, %24, %cst_20 {dimension_numbers = #tpu.dot_dimension_numbers<[1], [0], [0], [1], [0, 0, 1, 1], [], []>} : vector<128x128xf32>, vector<128x128xf32>, vector<128x128xf32> -> vector<128x128xf32>
    %c0_21 = arith.constant 0 : index
    %c0_22 = arith.constant 0 : index
    %c0_23 = arith.constant 0 : index
    %26 = vector.load %arg8[%c0_21, %c0_22, %c0_23] : memref<1x1x128xf32, #tpu.memory_space<vmem>>, vector<1x1x128xf32>
    %27 = vector.shape_cast %26 : vector<1x1x128xf32> to vector<1x128xf32>
    %28 = vector.broadcast %27 : vector<1x128xf32> to vector<128x128xf32>
    %29 = arith.addf %25, %28 : vector<128x128xf32>
    %cst_24 = arith.constant 0.000000e+00 : f32
    %30 = vector.broadcast %cst_24 : f32 to vector<128x128xf32>
    %31 = arith.cmpf ogt, %29, %30 : vector<128x128xf32>
    %32 = math.exp %29 : vector<128x128xf32>
    %cst_25 = arith.constant 1.000000e+00 : f32
    %33 = vector.broadcast %cst_25 : f32 to vector<128x128xf32>
    %34 = arith.subf %32, %33 : vector<128x128xf32>
    %cst_26 = arith.constant 1.67326319 : f32
    %35 = vector.broadcast %cst_26 : f32 to vector<128x128xf32>
    %36 = arith.mulf %35, %34 : vector<128x128xf32>
    %37 = arith.select %31, %29, %36 : vector<128x128xi1>, vector<128x128xf32>
    %cst_27 = arith.constant 1.05070102 : f32
    %38 = vector.broadcast %cst_27 : f32 to vector<128x128xf32>
    %39 = arith.mulf %38, %37 : vector<128x128xf32>
    %c0_28 = arith.constant 0 : index
    %c0_29 = arith.constant 0 : index
    %c0_30 = arith.constant 0 : index
    %40 = vector.load %arg9[%c0_28, %c0_29, %c0_30] : memref<1x1x128xf32, #tpu.memory_space<vmem>>, vector<1x1x128xf32>
    %41 = vector.shape_cast %40 : vector<1x1x128xf32> to vector<1x128xf32>
    %42 = vector.broadcast %41 : vector<1x128xf32> to vector<128x128xf32>
    %43 = arith.mulf %39, %42 : vector<128x128xf32>
    %cst_31 = arith.constant dense<0.000000e+00> : vector<128xf32>
    %44 = vector.multi_reduction <add>, %43, %cst_31 [1] : vector<128x128xf32> to vector<128xf32>
    %45 = vector.shape_cast %44 : vector<128xf32> to vector<128x1xf32>
    %46 = arith.index_cast %arg1 : i32 to index
    %47 = memref.load %arg10[%46] : memref<1xf32, #tpu.memory_space<smem>>
    %48 = vector.broadcast %47 : f32 to vector<128x1xf32>
    %49 = arith.addf %45, %48 : vector<128x1xf32>
    %50 = tpu.iota {dimensions = array<i32: 0>} : vector<128x128xi32>
    %51 = tpu.iota {dimensions = array<i32: 1>} : vector<128x128xi32>
    %52 = arith.cmpi eq, %50, %51 : vector<128x128xi32>
    %53 = arith.extui %52 : vector<128x128xi1> to vector<128x128xi32>
    %54 = arith.sitofp %53 : vector<128x128xi32> to vector<128x128xf32>
    %55 = vector.broadcast %49 : vector<128x1xf32> to vector<128x128xf32>
    %56 = arith.mulf %55, %54 : vector<128x128xf32>
    %cst_32 = arith.constant dense<0.000000e+00> : vector<128xf32>
    %57 = vector.multi_reduction <add>, %56, %cst_32 [0] : vector<128x128xf32> to vector<128xf32>
    %58 = vector.shape_cast %57 : vector<128xf32> to vector<1x128xf32>
    %c0_33 = arith.constant 0 : index
    %c0_34 = arith.constant 0 : index
    %c0_35 = arith.constant 0 : index
    %c0_36 = arith.constant 0 : index
    %59 = vector.load %arg11[%c0_33, %c0_34, %c0_35, %c0_36] : memref<1x1x1x128xf32, #tpu.memory_space<vmem>>, vector<1x1x1x128xf32>
    %60 = vector.shape_cast %59 : vector<1x1x1x128xf32> to vector<1x128xf32>
    %61 = vector.shape_cast %58 : vector<1x128xf32> to vector<1x1x1x128xf32>
    tpu.vector_store %arg11[%c0_33, %c0_34, %c0_35, %c0_36], %61 {strides = array<i32>} : memref<1x1x1x128xf32, #tpu.memory_space<vmem>>, vector<1x1x1x128xf32>,
    return
  }
  func.func @transform_0(%arg0: i32, %arg1: i32) -> (i32, i32) {
    %c0_i32 = arith.constant 0 : i32
    %c0_i32_0 = arith.constant 0 : i32
    return %arg0, %c0_i32 : i32, i32
  }
  func.func @transform_1(%arg0: i32, %arg1: i32) -> (i32, i32) {
    %c0_i32 = arith.constant 0 : i32
    %c0_i32_0 = arith.constant 0 : i32
    return %arg0, %c0_i32 : i32, i32
  }
  func.func @transform_2(%arg0: i32, %arg1: i32) -> (i32, i32, i32) {
    %c0_i32 = arith.constant 0 : i32
    %c0_i32_0 = arith.constant 0 : i32
    %c0_i32_1 = arith.constant 0 : i32
    return %arg1, %c0_i32, %c0_i32_0 : i32, i32, i32
  }
  func.func @transform_3(%arg0: i32, %arg1: i32) -> (i32, i32, i32) {
    %c0_i32 = arith.constant 0 : i32
    %c0_i32_0 = arith.constant 0 : i32
    %c0_i32_1 = arith.constant 0 : i32
    return %arg1, %c0_i32, %c0_i32_0 : i32, i32, i32
  }
  func.func @transform_4(%arg0: i32, %arg1: i32) -> (i32, i32, i32) {
    %c0_i32 = arith.constant 0 : i32
    %c0_i32_0 = arith.constant 0 : i32
    %c0_i32_1 = arith.constant 0 : i32
    return %arg1, %c0_i32, %c0_i32_0 : i32, i32, i32
  }
  func.func @transform_5(%arg0: i32, %arg1: i32) -> (i32, i32, i32) {
    %c0_i32 = arith.constant 0 : i32
    %c0_i32_0 = arith.constant 0 : i32
    %c0_i32_1 = arith.constant 0 : i32
    return %arg1, %c0_i32, %c0_i32_0 : i32, i32, i32
  }
  func.func @transform_6(%arg0: i32, %arg1: i32) -> (i32, i32, i32) {
    %c0_i32 = arith.constant 0 : i32
    %c0_i32_0 = arith.constant 0 : i32
    %c0_i32_1 = arith.constant 0 : i32
    return %arg1, %c0_i32, %c0_i32_0 : i32, i32, i32
  }
  func.func @transform_7(%arg0: i32, %arg1: i32) -> (i32, i32, i32) {
    %c0_i32 = arith.constant 0 : i32
    %c0_i32_0 = arith.constant 0 : i32
    %c0_i32_1 = arith.constant 0 : i32
    return %arg1, %c0_i32, %c0_i32_0 : i32, i32, i32
  }
  func.func @transform_8(%arg0: i32, %arg1: i32) -> i32 {
    %c0_i32 = arith.constant 0 : i32
    %c0_i32_0 = arith.constant 0 : i32
    return %c0_i32 : i32
  }
  func.func @transform_9(%arg0: i32, %arg1: i32) -> (i32, i32, i32, i32) {
    %c0_i32 = arith.constant 0 : i32
    %c0_i32_0 = arith.constant 0 : i32
    %c0_i32_1 = arith.constant 0 : i32
    return %arg1, %arg0, %c0_i32, %c0_i32_0 : i32, i32, i32, i32
  }
}

</mosaic_0001>

<llo_original>
// kernel: tpu_custom_call.1
$region0: #{tpu_custom_call.1}
  #allocation0 [shape = 'u32[]', space=smem, size = 0x4, offset = 0x4, fixed_abs, tag = 'smem constant byte address 0x4 - core index']
  #allocation1 [shape = 'u32[144,128]{1,0:T(1,128)}', space=vmem, size = 0x12000, scoped, tag = 'internal scratch']
  #allocation2 [shape = 'f32[1]{0:T(128)S(6)}', space=smem, size = 0x200, scoped, tag = 'scoped memory for tpu_custom_call.1']
  %s0 = inlined_call_operand.vmem [shape: f32[128,24], index: 0, kind: input, shape index: {}]
  %s1 = inlined_call_operand.vmem [shape: f32[128,8], index: 1, kind: input, shape index: {}]
  %s2 = inlined_call_operand.vmem [shape: f32[1,24,128], index: 2, kind: input, shape index: {}]
  %s3 = inlined_call_operand.vmem [shape: f32[1,8,128], index: 3, kind: input, shape index: {}]
  %s4 = inlined_call_operand.vmem [shape: f32[1,1,128], index: 4, kind: input, shape index: {}]
  %s5 = inlined_call_operand.vmem [shape: f32[1,128,128], index: 5, kind: input, shape index: {}]
  %s6 = inlined_call_operand.vmem [shape: f32[1,1,128], index: 6, kind: input, shape index: {}]
  %s7 = inlined_call_operand.vmem [shape: f32[1,1,128], index: 7, kind: input, shape index: {}]
  %s8 = inlined_call_operand.<no memory space> [shape: f32[1], index: 8, kind: input, shape index: {}]
  %s9 = inlined_call_operand.hbm [shape: f32[1,1,1,128], index: 9, kind: output, shape index: {}]
  %s10 = sld [smem:[#allocation0]]
  $region46: #{tpu_custom_call.1} parent=0
    _
  %s12 = ssub.s32 1, %s10
  %s13 = scalar_select 0, %s12, %s10
  %14 = sst [smem:[#allocation2]] %s8
  $region1: #{tpu_custom_call.1} parent=0
    #allocation3 [shape = 'u8[512]{0}', space=vmem, size = 0x400, scoped, tag = 'output window, operand 0, single buffered']
    #allocation4 [shape = 's32[1]{0}', space=sflag, size = 0x4, scoped, tag = 'scoped memory for tpu_custom_call.1']
    %15 = vsyncpa [#allocation4], 0
    // Predicated region
    $region2: #{tpu_custom_call.1} parent=1 // pred_check
      _
    $region3: #{tpu_custom_call.1} parent=1 // pred_check_branch
      %17 = sbr.rel (0) target = $region5
    $region4: #{tpu_custom_call.1} parent=1 // pred_region
      _
    $region5: #{tpu_custom_call.1} parent=1 // pred_fallthru
      _
    // Predicated region
    $region6: #{tpu_custom_call.1} parent=1 // pred_check
      _
    $region7: #{tpu_custom_call.1} parent=1 // pred_check_branch
      %19 = sbr.rel (0) target = $region9
    $region8: #{tpu_custom_call.1} parent=1 // pred_region
      _
    $region9: #{tpu_custom_call.1} parent=1 // pred_fallthru
      _
    // Predicated region
    $region10: #{tpu_custom_call.1} parent=1 // pred_check
      _
    $region11: #{tpu_custom_call.1} parent=1 // pred_check_branch
      %21 = sbr.rel (0) target = $region13
    $region12: #{tpu_custom_call.1} parent=1 // pred_region
      _
    $region13: #{tpu_custom_call.1} parent=1 // pred_fallthru
      _
    // Predicated region
    $region14: #{tpu_custom_call.1} parent=1 // pred_check
      _
    $region15: #{tpu_custom_call.1} parent=1 // pred_check_branch
      %23 = sbr.rel (0) target = $region17
    $region16: #{tpu_custom_call.1} parent=1 // pred_region
      _
    $region17: #{tpu_custom_call.1} parent=1 // pred_fallthru
      _
    // Predicated region
    $region18: #{tpu_custom_call.1} parent=1 // pred_check
      _
    $region19: #{tpu_custom_call.1} parent=1 // pred_check_branch
      %25 = sbr.rel (0) target = $region21
    $region20: #{tpu_custom_call.1} parent=1 // pred_region
      _
    $region21: #{tpu_custom_call.1} parent=1 // pred_fallthru
      _
    // Predicated region
    $region22: #{tpu_custom_call.1} parent=1 // pred_check
      _
    $region23: #{tpu_custom_call.1} parent=1 // pred_check_branch
      %27 = sbr.rel (0) target = $region25
    $region24: #{tpu_custom_call.1} parent=1 // pred_region
      _
    $region25: #{tpu_custom_call.1} parent=1 // pred_fallthru
      _
    // Predicated region
    $region26: #{tpu_custom_call.1} parent=1 // pred_check
      _
    $region27: #{tpu_custom_call.1} parent=1 // pred_check_branch
      %29 = sbr.rel (0) target = $region29
    $region28: #{tpu_custom_call.1} parent=1 // pred_region
      _
    $region29: #{tpu_custom_call.1} parent=1 // pred_fallthru
      _
    // Predicated region
    $region30: #{tpu_custom_call.1} parent=1 // pred_check
      _
    $region31: #{tpu_custom_call.1} parent=1 // pred_check_branch
      %31 = sbr.rel (0) target = $region33
    $region32: #{tpu_custom_call.1} parent=1 // pred_region
      _
    $region33: #{tpu_custom_call.1} parent=1 // pred_fallthru
      _
    // Predicated region
    $region34: #{tpu_custom_call.1} parent=1 // pred_check
      _
    $region35: #{tpu_custom_call.1} parent=1 // pred_check_branch
      %33 = sbr.rel (0) target = $region37
    $region36: #{tpu_custom_call.1} parent=1 // pred_region
      _
    $region37: #{tpu_custom_call.1} parent=1 // pred_fallthru
      _
    %v34 = vld [vmem:[%s0] sm:$0xff]
    %v35 = vld [vmem:[%s0 + $0x8] sm:$0xff]
    %v36 = vld [vmem:[%s0 + $0x10] sm:$0xff]
    %v37 = vld [vmem:[%s0 + $0x18] sm:$0xff]
    %v38 = vld [vmem:[%s0 + $0x20] sm:$0xff]
    %v39 = vld [vmem:[%s0 + $0x28] sm:$0xff]
    %v40 = vld [vmem:[%s0 + $0x30] sm:$0xff]
    %v41 = vld [vmem:[%s0 + $0x38] sm:$0xff]
    %v42 = vld [vmem:[%s0 + $0x40] sm:$0xff]
    %v43 = vld [vmem:[%s0 + $0x48] sm:$0xff]
    %v44 = vld [vmem:[%s0 + $0x50] sm:$0xff]
    %v45 = vld [vmem:[%s0 + $0x58] sm:$0xff]
    %v46 = vld [vmem:[%s0 + $0x60] sm:$0xff]
    %v47 = vld [vmem:[%s0 + $0x68] sm:$0xff]
    %v48 = vld [vmem:[%s0 + $0x70] sm:$0xff]
    %v49 = vld [vmem:[%s0 + $0x78] sm:$0xff]
    %v50 = vld [vmem:[%s2] sm:$0xff]
    %v51 = vld [vmem:[%s2 + $0x8] sm:$0xff]
    %v52 = vld [vmem:[%s2 + $0x10] sm:$0xff]
    %v53 = vld [vmem:[%s1] sm:$0xff]
    %v54 = vld [vmem:[%s1 + $0x8] sm:$0xff]
    %v55 = vld [vmem:[%s1 + $0x10] sm:$0xff]
    %v56 = vld [vmem:[%s1 + $0x18] sm:$0xff]
    %v57 = vld [vmem:[%s1 + $0x20] sm:$0xff]
    %v58 = vld [vmem:[%s1 + $0x28] sm:$0xff]
    %v59 = vld [vmem:[%s1 + $0x30] sm:$0xff]
    %v60 = vld [vmem:[%s1 + $0x38] sm:$0xff]
    %v61 = vld [vmem:[%s1 + $0x40] sm:$0xff]
    %v62 = vld [vmem:[%s1 + $0x48] sm:$0xff]
    %v63 = vld [vmem:[%s1 + $0x50] sm:$0xff]
    %v64 = vld [vmem:[%s1 + $0x58] sm:$0xff]
    %v65 = vld [vmem:[%s1 + $0x60] sm:$0xff]
    %v66 = vld [vmem:[%s1 + $0x68] sm:$0xff]
    %v67 = vld [vmem:[%s1 + $0x70] sm:$0xff]
    %v68 = vld [vmem:[%s1 + $0x78] sm:$0xff]
    %v69 = vld [vmem:[%s3] sm:$0xff]
    %vm70 = vcmask 64512
    %v72 = vsel %vm70, %v53, 0
    %v75 = vsel %vm70, %v54, 0
    %v78 = vsel %vm70, %v55, 0
    %v81 = vsel %vm70, %v56, 0
    %v84 = vsel %vm70, %v57, 0
    %v87 = vsel %vm70, %v58, 0
    %v90 = vsel %vm70, %v59, 0
    %v93 = vsel %vm70, %v60, 0
    %v96 = vsel %vm70, %v61, 0
    %v99 = vsel %vm70, %v62, 0
    %v102 = vsel %vm70, %v63, 0
    %v105 = vsel %vm70, %v64, 0
    %v108 = vsel %vm70, %v65, 0
    %v111 = vsel %vm70, %v66, 0
    %v114 = vsel %vm70, %v67, 0
    %v117 = vsel %vm70, %v68, 0
    %119 = vmatprep.subr.mxu0 0.0
    %120 = vmatpush1.msra.mxu0 %v69
    %121 = vmatprep.subr.mxu0 0.0
    %122 = vmatpush1.msra.mxu0 0.0
    %123 = vmatprep.subr.mxu0 0.0
    %124 = vmatpush1.msra.mxu0 0.0
    %125 = vmatprep.subr.mxu0 0.0
    %126 = vmatpush1.msra.mxu0 0.0
    %127 = vmatprep.subr.mxu0 0.0
    %128 = vmatpush1.msra.mxu0 0.0
    %129 = vmatprep.subr.mxu0 0.0
    %130 = vmatpush1.msra.mxu0 0.0
    %131 = vmatprep.subr.mxu0 0.0
    %132 = vmatpush1.msra.mxu0 0.0
    %133 = vmatprep.subr.mxu0 0.0
    %134 = vmatpush1.msra.mxu0 0.0
    %135 = vmatprep.subr.mxu0 0.0
    %136 = vmatpush1.msra.mxu0 0.0
    %137 = vmatprep.subr.mxu0 0.0
    %138 = vmatpush1.msra.mxu0 0.0
    %139 = vmatprep.subr.mxu0 0.0
    %140 = vmatpush1.msra.mxu0 0.0
    %141 = vmatprep.subr.mxu0 0.0
    %142 = vmatpush1.msra.mxu0 0.0
    %143 = vmatprep.subr.mxu0 0.0
    %144 = vmatpush1.msra.mxu0 0.0
    %145 = vmatprep.subr.mxu0 0.0
    %146 = vmatpush1.msra.mxu0 0.0
    %147 = vmatprep.subr.mxu0 0.0
    %148 = vmatpush1.msra.mxu0 0.0
    %149 = vmatprep.subr.mxu0 0.0
    %150 = vmatpush1.msra.mxu0 0.0
    %151 = vmatprep.subr.mxu0 0.0
    %152 = vmatpush1.msra.mxu0 0.0
    %153 = vmatprep.subr.mxu0 0.0
    %154 = vmatpush1.msra.mxu0 0.0
    %155 = vmatprep.subr.mxu0 0.0
    %156 = vmatpush1.msra.mxu0 0.0
    %157 = vmatprep.subr.mxu0 0.0
    %158 = vmatpush1.msra.mxu0 0.0
    %159 = vmatprep.subr.mxu0 0.0
    %160 = vmatpush1.msra.mxu0 0.0
    %161 = vmatprep.subr.mxu0 0.0
    %162 = vmatpush1.msra.mxu0 0.0
    %163 = vmatprep.subr.mxu0 0.0
    %164 = vmatpush1.msra.mxu0 0.0
    %165 = vmatprep.subr.mxu0 0.0
    %166 = vmatpush1.msra.mxu0 0.0
    %167 = vmatprep.subr.mxu0 0.0
    %168 = vmatpush1.msra.mxu0 0.0
    %169 = vmatprep.subr.mxu0 0.0
    %170 = vmatpush1.msra.mxu0 0.0
    %171 = vmatprep.subr.mxu0 0.0
    %172 = vmatpush1.msra.mxu0 0.0
    %173 = vmatprep.subr.mxu0 0.0
    %174 = vmatpush1.msra.mxu0 0.0
    %175 = vmatprep.subr.mxu0 0.0
    %176 = vmatpush1.msra.mxu0 0.0
    %177 = vmatprep.subr.mxu0 0.0
    %178 = vmatpush1.msra.mxu0 0.0
    %179 = vmatprep.subr.mxu0 0.0
    %180 = vmatpush1.msra.mxu0 0.0
    %181 = vmatprep.subr.mxu0 0.0
    %182 = vmatpush1.msra.mxu0 0.0
    %183 = vmatprep.mubr.f32.mxu0 0.0
    %184 = vmatmul.mubr.f32.gmra.mrb[0].mxu0 %v72
    %v185 = vpop.f32.mrb[0].mxu0
    %v186 = vadd.f32 0.0, %v185
    %v187 = vpop.f32.mrb[0].mxu0
    %188 = vmatprep.mubr.f32.mxu0 0.0
    %189 = vmatmul.mubr.f32.gmra.mrb[0].mxu0 %v75
    %v190 = vpop.f32.mrb[0].mxu0
    %v191 = vadd.f32 0.0, %v190
    %v192 = vpop.f32.mrb[0].mxu0
    %193 = vmatprep.mubr.f32.mxu0 0.0
    %194 = vmatmul.mubr.f32.gmra.mrb[0].mxu0 %v78
    %v195 = vpop.f32.mrb[0].mxu0
    %v196 = vadd.f32 0.0, %v195
    %v197 = vpop.f32.mrb[0].mxu0
    %198 = vmatprep.mubr.f32.mxu0 0.0
    %199 = vmatmul.mubr.f32.gmra.mrb[0].mxu0 %v81
    %v200 = vpop.f32.mrb[0].mxu0
    %v201 = vadd.f32 0.0, %v200
    %v202 = vpop.f32.mrb[0].mxu0
    %203 = vmatprep.mubr.f32.mxu0 0.0
    %204 = vmatmul.mubr.f32.gmra.mrb[0].mxu0 %v84
    %v205 = vpop.f32.mrb[0].mxu0
    %v206 = vadd.f32 0.0, %v205
    %v207 = vpop.f32.mrb[0].mxu0
    %208 = vmatprep.mubr.f32.mxu0 0.0
    %209 = vmatmul.mubr.f32.gmra.mrb[0].mxu0 %v87
    %v210 = vpop.f32.mrb[0].mxu0
    %v211 = vadd.f32 0.0, %v210
    %v212 = vpop.f32.mrb[0].mxu0
    %213 = vmatprep.mubr.f32.mxu0 0.0
    %214 = vmatmul.mubr.f32.gmra.mrb[0].mxu0 %v90
    %v215 = vpop.f32.mrb[0].mxu0
    %v216 = vadd.f32 0.0, %v215
    %v217 = vpop.f32.mrb[0].mxu0
    %218 = vmatprep.mubr.f32.mxu0 0.0
    %219 = vmatmul.mubr.f32.gmra.mrb[0].mxu0 %v93
    %v220 = vpop.f32.mrb[0].mxu0
    %v221 = vadd.f32 0.0, %v220
    %v222 = vpop.f32.mrb[0].mxu0
    %223 = vmatprep.mubr.f32.mxu0 0.0
    %224 = vmatmul.mubr.f32.gmra.mrb[0].mxu0 %v96
    %v225 = vpop.f32.mrb[0].mxu0
    %v226 = vadd.f32 0.0, %v225
    %v227 = vpop.f32.mrb[0].mxu0
    %228 = vmatprep.mubr.f32.mxu0 0.0
    %229 = vmatmul.mubr.f32.gmra.mrb[0].mxu0 %v99
    %v230 = vpop.f32.mrb[0].mxu0
    %v231 = vadd.f32 0.0, %v230
    %v232 = vpop.f32.mrb[0].mxu0
    %233 = vmatprep.mubr.f32.mxu0 0.0
    %234 = vmatmul.mubr.f32.gmra.mrb[0].mxu0 %v102
    %v235 = vpop.f32.mrb[0].mxu0
    %v236 = vadd.f32 0.0, %v235
    %v237 = vpop.f32.mrb[0].mxu0
    %238 = vmatprep.mubr.f32.mxu0 0.0
    %239 = vmatmul.mubr.f32.gmra.mrb[0].mxu0 %v105
    %v240 = vpop.f32.mrb[0].mxu0
    %v241 = vadd.f32 0.0, %v240
    %v242 = vpop.f32.mrb[0].mxu0
    %243 = vmatprep.mubr.f32.mxu0 0.0
    %244 = vmatmul.mubr.f32.gmra.mrb[0].mxu0 %v108
    %v245 = vpop.f32.mrb[0].mxu0
    %v246 = vadd.f32 0.0, %v245
    %v247 = vpop.f32.mrb[0].mxu0
    %248 = vmatprep.mubr.f32.mxu0 0.0
    %249 = vmatmul.mubr.f32.gmra.mrb[0].mxu0 %v111
    %v250 = vpop.f32.mrb[0].mxu0
    %v251 = vadd.f32 0.0, %v250
    %v252 = vpop.f32.mrb[0].mxu0
    %253 = vmatprep.mubr.f32.mxu0 0.0
    %254 = vmatmul.mubr.f32.gmra.mrb[0].mxu0 %v114
    %v255 = vpop.f32.mrb[0].mxu0
    %v256 = vadd.f32 0.0, %v255
    %v257 = vpop.f32.mrb[0].mxu0
    %258 = vmatprep.mubr.f32.mxu0 0.0
    %259 = vmatmul.mubr.f32.gmra.mrb[0].mxu0 %v117
    %v260 = vpop.f32.mrb[0].mxu0
    %v261 = vadd.f32 0.0, %v260
    %v262 = vpop.f32.mrb[0].mxu0
    %263 = vdwg.mxu0
    %vm264 = vcmask 195584
    %v266 = vsel %vm264, %v34, 0
    %v269 = vsel %vm264, %v35, 0
    %v272 = vsel %vm264, %v36, 0
    %v275 = vsel %vm264, %v37, 0
    %v278 = vsel %vm264, %v38, 0
    %v281 = vsel %vm264, %v39, 0
    %v284 = vsel %vm264, %v40, 0
    %v287 = vsel %vm264, %v41, 0
    %v290 = vsel %vm264, %v42, 0
    %v293 = vsel %vm264, %v43, 0
    %v296 = vsel %vm264, %v44, 0
    %v299 = vsel %vm264, %v45, 0
    %v302 = vsel %vm264, %v46, 0
    %v305 = vsel %vm264, %v47, 0
    %v308 = vsel %vm264, %v48, 0
    %v311 = vsel %vm264, %v49, 0
    %313 = vmatprep.subr.mxu0 0.0
    %314 = vmatpush1.msra.mxu0 %v50
    %315 = vmatprep.subr.mxu0 0.0
    %316 = vmatpush1.msra.mxu0 %v51
    %317 = vmatprep.subr.mxu0 0.0
    %318 = vmatpush1.msra.mxu0 %v52
    %319 = vmatprep.subr.mxu0 0.0
    %320 = vmatpush1.msra.mxu0 0.0
    %321 = vmatprep.subr.mxu0 0.0
    %322 = vmatpush1.msra.mxu0 0.0
    %323 = vmatprep.subr.mxu0 0.0
    %324 = vmatpush1.msra.mxu0 0.0
    %325 = vmatprep.subr.mxu0 0.0
    %326 = vmatpush1.msra.mxu0 0.0
    %327 = vmatprep.subr.mxu0 0.0
    %328 = vmatpush1.msra.mxu0 0.0
    %329 = vmatprep.subr.mxu0 0.0
    %330 = vmatpush1.msra.mxu0 0.0
    %331 = vmatprep.subr.mxu0 0.0
    %332 = vmatpush1.msra.mxu0 0.0
    %333 = vmatprep.subr.mxu0 0.0
    %334 = vmatpush1.msra.mxu0 0.0
    %335 = vmatprep.subr.mxu0 0.0
    %336 = vmatpush1.msra.mxu0 0.0
    %337 = vmatprep.subr.mxu0 0.0
    %338 = vmatpush1.msra.mxu0 0.0
    %339 = vmatprep.subr.mxu0 0.0
    %340 = vmatpush1.msra.mxu0 0.0
    %341 = vmatprep.subr.mxu0 0.0
    %342 = vmatpush1.msra.mxu0 0.0
    %343 = vmatprep.subr.mxu0 0.0
    %344 = vmatpush1.msra.mxu0 0.0
    %345 = vmatprep.subr.mxu0 0.0
    %346 = vmatpush1.msra.mxu0 0.0
    %347 = vmatprep.subr.mxu0 0.0
    %348 = vmatpush1.msra.mxu0 0.0
    %349 = vmatprep.subr.mxu0 0.0
    %350 = vmatpush1.msra.mxu0 0.0
    %351 = vmatprep.subr.mxu0 0.0
    %352 = vmatpush1.msra.mxu0 0.0
    %353 = vmatprep.subr.mxu0 0.0
    %354 = vmatpush1.msra.mxu0 0.0
    %355 = vmatprep.subr.mxu0 0.0
    %356 = vmatpush1.msra.mxu0 0.0
    %357 = vmatprep.subr.mxu0 0.0
    %358 = vmatpush1.msra.mxu0 0.0
    %359 = vmatprep.subr.mxu0 0.0
    %360 = vmatpush1.msra.mxu0 0.0
    %361 = vmatprep.subr.mxu0 0.0
    %362 = vmatpush1.msra.mxu0 0.0
    %363 = vmatprep.subr.mxu0 0.0
    %364 = vmatpush1.msra.mxu0 0.0
    %365 = vmatprep.subr.mxu0 0.0
    %366 = vmatpush1.msra.mxu0 0.0
    %367 = vmatprep.subr.mxu0 0.0
    %368 = vmatpush1.msra.mxu0 0.0
    %369 = vmatprep.subr.mxu0 0.0
    %370 = vmatpush1.msra.mxu0 0.0
    %371 = vmatprep.subr.mxu0 0.0
    %372 = vmatpush1.msra.mxu0 0.0
    %373 = vmatprep.subr.mxu0 0.0
    %374 = vmatpush1.msra.mxu0 0.0
    %375 = vmatprep.subr.mxu0 0.0
    %376 = vmatpush1.msra.mxu0 0.0
    %377 = vmatprep.mubr.f32.mxu0 0.0
    %378 = vmatmul.mubr.f32.gmra.mrb[0].mxu0 %v266
    %v379 = vpop.f32.mrb[0].mxu0
    %v380 = vadd.f32 %v186, %v379
    %v381 = vpop.f32.mrb[0].mxu0
    %382 = vmatprep.mubr.f32.mxu0 0.0
    %383 = vmatmul.mubr.f32.gmra.mrb[0].mxu0 %v269
    %v384 = vpop.f32.mrb[0].mxu0
    %v385 = vadd.f32 %v191, %v384
    %v386 = vpop.f32.mrb[0].mxu0
    %387 = vmatprep.mubr.f32.mxu0 0.0
    %388 = vmatmul.mubr.f32.gmra.mrb[0].mxu0 %v272
    %v389 = vpop.f32.mrb[0].mxu0
    %v390 = vadd.f32 %v196, %v389
    %v391 = vpop.f32.mrb[0].mxu0
    %392 = vmatprep.mubr.f32.mxu0 0.0
    %393 = vmatmul.mubr.f32.gmra.mrb[0].mxu0 %v275
    %v394 = vpop.f32.mrb[0].mxu0
    %v395 = vadd.f32 %v201, %v394
    %v396 = vpop.f32.mrb[0].mxu0
    %397 = vmatprep.mubr.f32.mxu0 0.0
    %398 = vmatmul.mubr.f32.gmra.mrb[0].mxu0 %v278
    %v399 = vpop.f32.mrb[0].mxu0
    %v400 = vadd.f32 %v206, %v399
    %v401 = vpop.f32.mrb[0].mxu0
    %402 = vmatprep.mubr.f32.mxu0 0.0
    %403 = vmatmul.mubr.f32.gmra.mrb[0].mxu0 %v281
    %v404 = vpop.f32.mrb[0].mxu0
    %v405 = vadd.f32 %v211, %v404
    %v406 = vpop.f32.mrb[0].mxu0
    %407 = vmatprep.mubr.f32.mxu0 0.0
    %408 = vmatmul.mubr.f32.gmra.mrb[0].mxu0 %v284
    %v409 = vpop.f32.mrb[0].mxu0
    %v410 = vadd.f32 %v216, %v409
    %v411 = vpop.f32.mrb[0].mxu0
    %412 = vmatprep.mubr.f32.mxu0 0.0
    %413 = vmatmul.mubr.f32.gmra.mrb[0].mxu0 %v287
    %v414 = vpop.f32.mrb[0].mxu0
    %v415 = vadd.f32 %v221, %v414
    %v416 = vpop.f32.mrb[0].mxu0
    %417 = vmatprep.mubr.f32.mxu0 0.0
    %418 = vmatmul.mubr.f32.gmra.mrb[0].mxu0 %v290
    %v419 = vpop.f32.mrb[0].mxu0
    %v420 = vadd.f32 %v226, %v419
    %v421 = vpop.f32.mrb[0].mxu0
    %422 = vmatprep.mubr.f32.mxu0 0.0
    %423 = vmatmul.mubr.f32.gmra.mrb[0].mxu0 %v293
    %v424 = vpop.f32.mrb[0].mxu0
    %v425 = vadd.f32 %v231, %v424
    %v426 = vpop.f32.mrb[0].mxu0
    %427 = vmatprep.mubr.f32.mxu0 0.0
    %428 = vmatmul.mubr.f32.gmra.mrb[0].mxu0 %v296
    %v429 = vpop.f32.mrb[0].mxu0
    %v430 = vadd.f32 %v236, %v429
    %v431 = vpop.f32.mrb[0].mxu0
    %432 = vmatprep.mubr.f32.mxu0 0.0
    %433 = vmatmul.mubr.f32.gmra.mrb[0].mxu0 %v299
    %v434 = vpop.f32.mrb[0].mxu0
    %v435 = vadd.f32 %v241, %v434
    %v436 = vpop.f32.mrb[0].mxu0
    %437 = vmatprep.mubr.f32.mxu0 0.0
    %438 = vmatmul.mubr.f32.gmra.mrb[0].mxu0 %v302
    %v439 = vpop.f32.mrb[0].mxu0
    %v440 = vadd.f32 %v246, %v439
    %v441 = vpop.f32.mrb[0].mxu0
    %442 = vmatprep.mubr.f32.mxu0 0.0
    %443 = vmatmul.mubr.f32.gmra.mrb[0].mxu0 %v305
    %v444 = vpop.f32.mrb[0].mxu0
    %v445 = vadd.f32 %v251, %v444
    %v446 = vpop.f32.mrb[0].mxu0
    %447 = vmatprep.mubr.f32.mxu0 0.0
    %448 = vmatmul.mubr.f32.gmra.mrb[0].mxu0 %v308
    %v449 = vpop.f32.mrb[0].mxu0
    %v450 = vadd.f32 %v256, %v449
    %v451 = vpop.f32.mrb[0].mxu0
    %452 = vmatprep.mubr.f32.mxu0 0.0
    %453 = vmatmul.mubr.f32.gmra.mrb[0].mxu0 %v311
    %v454 = vpop.f32.mrb[0].mxu0
    %v455 = vadd.f32 %v261, %v454
    %v456 = vpop.f32.mrb[0].mxu0
    %457 = vdwg.mxu0
    %v458 = vld [vmem:[%s4] sm:$0x1]
    %v460 = vlaneseq
    %v461 = vshrl.u32 %v460, 7
    %v462 = vsub.s32 0, %v461
    %v463 = vrot.slane %v458, %v462
    %v465 = vadd.f32 %v380, %v463
    %v466 = vadd.f32 %v385, %v463
    %v467 = vadd.f32 %v390, %v463
    %v468 = vadd.f32 %v395, %v463
    %v469 = vadd.f32 %v400, %v463
    %v470 = vadd.f32 %v405, %v463
    %v471 = vadd.f32 %v410, %v463
    %v472 = vadd.f32 %v415, %v463
    %v473 = vadd.f32 %v420, %v463
    %v474 = vadd.f32 %v425, %v463
    %v475 = vadd.f32 %v430, %v463
    %v476 = vadd.f32 %v435, %v463
    %v477 = vadd.f32 %v440, %v463
    %v478 = vadd.f32 %v445, %v463
    %v479 = vadd.f32 %v450, %v463
    %v480 = vadd.f32 %v455, %v463
    %vm481 = vcmp.gt.f32.partialorder %v465, 0.0
    %vm482 = vcmp.gt.f32.partialorder %v466, 0.0
    %vm483 = vcmp.gt.f32.partialorder %v467, 0.0
    %vm484 = vcmp.gt.f32.partialorder %v468, 0.0
    %vm485 = vcmp.gt.f32.partialorder %v469, 0.0
    %vm486 = vcmp.gt.f32.partialorder %v470, 0.0
    %vm487 = vcmp.gt.f32.partialorder %v471, 0.0
    %vm488 = vcmp.gt.f32.partialorder %v472, 0.0
    %vm489 = vcmp.gt.f32.partialorder %v473, 0.0
    %vm490 = vcmp.gt.f32.partialorder %v474, 0.0
    %vm491 = vcmp.gt.f32.partialorder %v475, 0.0
    %vm492 = vcmp.gt.f32.partialorder %v476, 0.0
    %vm493 = vcmp.gt.f32.partialorder %v477, 0.0
    %vm494 = vcmp.gt.f32.partialorder %v478, 0.0
    %vm495 = vcmp.gt.f32.partialorder %v479, 0.0
    %vm496 = vcmp.gt.f32.partialorder %v480, 0.0
    %v497 = vmul.f32 %v465, 1.442695
    %v498 = vpow.pop %v497
    %v499 = vmul.f32 %v466, 1.442695
    %v500 = vpow.pop %v499
    %v501 = vmul.f32 %v467, 1.442695
    %v502 = vpow.pop %v501
    %v503 = vmul.f32 %v468, 1.442695
    %v504 = vpow.pop %v503
    %v505 = vmul.f32 %v469, 1.442695
    %v506 = vpow.pop %v505
    %v507 = vmul.f32 %v470, 1.442695
    %v508 = vpow.pop %v507
    %v509 = vmul.f32 %v471, 1.442695
    %v510 = vpow.pop %v509
    %v511 = vmul.f32 %v472, 1.442695
    %v512 = vpow.pop %v511
    %v513 = vmul.f32 %v473, 1.442695
    %v514 = vpow.pop %v513
    %v515 = vmul.f32 %v474, 1.442695
    %v516 = vpow.pop %v515
    %v517 = vmul.f32 %v475, 1.442695
    %v518 = vpow.pop %v517
    %v519 = vmul.f32 %v476, 1.442695
    %v520 = vpow.pop %v519
    %v521 = vmul.f32 %v477, 1.442695
    %v522 = vpow.pop %v521
    %v523 = vmul.f32 %v478, 1.442695
    %v524 = vpow.pop %v523
    %v525 = vmul.f32 %v479, 1.442695
    %v526 = vpow.pop %v525
    %v527 = vmul.f32 %v480, 1.442695
    %v528 = vpow.pop %v527
    %v529 = vsub.f32 %v498, 1.0
    %v530 = vsub.f32 %v500, 1.0
    %v531 = vsub.f32 %v502, 1.0
    %v532 = vsub.f32 %v504, 1.0
    %v533 = vsub.f32 %v506, 1.0
    %v534 = vsub.f32 %v508, 1.0
    %v535 = vsub.f32 %v510, 1.0
    %v536 = vsub.f32 %v512, 1.0
    %v537 = vsub.f32 %v514, 1.0
    %v538 = vsub.f32 %v516, 1.0
    %v539 = vsub.f32 %v518, 1.0
    %v540 = vsub.f32 %v520, 1.0
    %v541 = vsub.f32 %v522, 1.0
    %v542 = vsub.f32 %v524, 1.0
    %v543 = vsub.f32 %v526, 1.0
    %v544 = vsub.f32 %v528, 1.0
    %v545 = vmul.f32 %v529, 1.6732632
    %v546 = vmul.f32 %v530, 1.6732632
    %v547 = vmul.f32 %v531, 1.6732632
    %v548 = vmul.f32 %v532, 1.6732632
    %v549 = vmul.f32 %v533, 1.6732632
    %v550 = vmul.f32 %v534, 1.6732632
    %v551 = vmul.f32 %v535, 1.6732632
    %v552 = vmul.f32 %v536, 1.6732632
    %v553 = vmul.f32 %v537, 1.6732632
    %v554 = vmul.f32 %v538, 1.6732632
    %v555 = vmul.f32 %v539, 1.6732632
    %v556 = vmul.f32 %v540, 1.6732632
    %v557 = vmul.f32 %v541, 1.6732632
    %v558 = vmul.f32 %v542, 1.6732632
    %v559 = vmul.f32 %v543, 1.6732632
    %v560 = vmul.f32 %v544, 1.6732632
    %v561 = vsel %vm481, %v465, %v545
    %v562 = vsel %vm482, %v466, %v546
    %v563 = vsel %vm483, %v467, %v547
    %v564 = vsel %vm484, %v468, %v548
    %v565 = vsel %vm485, %v469, %v549
    %v566 = vsel %vm486, %v470, %v550
    %v567 = vsel %vm487, %v471, %v551
    %v568 = vsel %vm488, %v472, %v552
    %v569 = vsel %vm489, %v473, %v553
    %v570 = vsel %vm490, %v474, %v554
    %v571 = vsel %vm491, %v475, %v555
    %v572 = vsel %vm492, %v476, %v556
    %v573 = vsel %vm493, %v477, %v557
    %v574 = vsel %vm494, %v478, %v558
    %v575 = vsel %vm495, %v479, %v559
    %v576 = vsel %vm496, %v480, %v560
    %v577 = vmul.f32 %v561, 1.050701
    %v578 = vmul.f32 %v562, 1.050701
    %v579 = vmul.f32 %v563, 1.050701
    %v580 = vmul.f32 %v564, 1.050701
    %v581 = vmul.f32 %v565, 1.050701
    %v582 = vmul.f32 %v566, 1.050701
    %v583 = vmul.f32 %v567, 1.050701
    %v584 = vmul.f32 %v568, 1.050701
    %v585 = vmul.f32 %v569, 1.050701
    %v586 = vmul.f32 %v570, 1.050701
    %v587 = vmul.f32 %v571, 1.050701
    %v588 = vmul.f32 %v572, 1.050701
    %v589 = vmul.f32 %v573, 1.050701
    %v590 = vmul.f32 %v574, 1.050701
    %v591 = vmul.f32 %v575, 1.050701
    %v592 = vmul.f32 %v576, 1.050701
    %v593 = vld [vmem:[%s5] sm:$0xff]
    %v594 = vld [vmem:[%s5 + $0x8] sm:$0xff]
    %v595 = vld [vmem:[%s5 + $0x10] sm:$0xff]
    %v596 = vld [vmem:[%s5 + $0x18] sm:$0xff]
    %v597 = vld [vmem:[%s5 + $0x20] sm:$0xff]
    %v598 = vld [vmem:[%s5 + $0x28] sm:$0xff]
    %v599 = vld [vmem:[%s5 + $0x30] sm:$0xff]
    %v600 = vld [vmem:[%s5 + $0x38] sm:$0xff]
    %v601 = vld [vmem:[%s5 + $0x40] sm:$0xff]
    %v602 = vld [vmem:[%s5 + $0x48] sm:$0xff]
    %v603 = vld [vmem:[%s5 + $0x50] sm:$0xff]
    %v604 = vld [vmem:[%s5 + $0x58] sm:$0xff]
    %v605 = vld [vmem:[%s5 + $0x60] sm:$0xff]
    %v606 = vld [vmem:[%s5 + $0x68] sm:$0xff]
    %v607 = vld [vmem:[%s5 + $0x70] sm:$0xff]
    %v608 = vld [vmem:[%s5 + $0x78] sm:$0xff]
    %v609 = vld [vmem:[%s6] sm:$0x1]
    %v611 = vlaneseq
    %v612 = vshrl.u32 %v611, 7
    %v613 = vsub.s32 0, %v612
    %v614 = vrot.slane %v609, %v613
    %616 = vmatprep.subr.mxu0 0.0
    %617 = vmatpush1.msra.mxu0 %v593
    %618 = vmatprep.subr.mxu0 0.0
    %619 = vmatpush1.msra.mxu0 %v594
    %620 = vmatprep.subr.mxu0 0.0
    %621 = vmatpush1.msra.mxu0 %v595
    %622 = vmatprep.subr.mxu0 0.0
    %623 = vmatpush1.msra.mxu0 %v596
    %624 = vmatprep.subr.mxu0 0.0
    %625 = vmatpush1.msra.mxu0 %v597
    %626 = vmatprep.subr.mxu0 0.0
    %627 = vmatpush1.msra.mxu0 %v598
    %628 = vmatprep.subr.mxu0 0.0
    %629 = vmatpush1.msra.mxu0 %v599
    %630 = vmatprep.subr.mxu0 0.0
    %631 = vmatpush1.msra.mxu0 %v600
    %632 = vmatprep.subr.mxu0 0.0
    %633 = vmatpush1.msra.mxu0 %v601
    %634 = vmatprep.subr.mxu0 0.0
    %635 = vmatpush1.msra.mxu0 %v602
    %636 = vmatprep.subr.mxu0 0.0
    %637 = vmatpush1.msra.mxu0 %v603
    %638 = vmatprep.subr.mxu0 0.0
    %639 = vmatpush1.msra.mxu0 %v604
    %640 = vmatprep.subr.mxu0 0.0
    %641 = vmatpush1.msra.mxu0 %v605
    %642 = vmatprep.subr.mxu0 0.0
    %643 = vmatpush1.msra.mxu0 %v606
    %644 = vmatprep.subr.mxu0 0.0
    %645 = vmatpush1.msra.mxu0 %v607
    %646 = vmatprep.subr.mxu0 0.0
    %647 = vmatpush1.msra.mxu0 %v608
    %648 = vmatprep.subr.mxu0 0.0
    %649 = vmatpush1.msra.mxu0 0.0
    %650 = vmatprep.subr.mxu0 0.0
    %651 = vmatpush1.msra.mxu0 0.0
    %652 = vmatprep.subr.mxu0 0.0
    %653 = vmatpush1.msra.mxu0 0.0
    %654 = vmatprep.subr.mxu0 0.0
    %655 = vmatpush1.msra.mxu0 0.0
    %656 = vmatprep.subr.mxu0 0.0
    %657 = vmatpush1.msra.mxu0 0.0
    %658 = vmatprep.subr.mxu0 0.0
    %659 = vmatpush1.msra.mxu0 0.0
    %660 = vmatprep.subr.mxu0 0.0
    %661 = vmatpush1.msra.mxu0 0.0
    %662 = vmatprep.subr.mxu0 0.0
    %663 = vmatpush1.msra.mxu0 0.0
    %664 = vmatprep.subr.mxu0 0.0
    %665 = vmatpush1.msra.mxu0 0.0
    %666 = vmatprep.subr.mxu0 0.0
    %667 = vmatpush1.msra.mxu0 0.0
    %668 = vmatprep.subr.mxu0 0.0
    %669 = vmatpush1.msra.mxu0 0.0
    %670 = vmatprep.subr.mxu0 0.0
    %671 = vmatpush1.msra.mxu0 0.0
    %672 = vmatprep.subr.mxu0 0.0
    %673 = vmatpush1.msra.mxu0 0.0
    %674 = vmatprep.subr.mxu0 0.0
    %675 = vmatpush1.msra.mxu0 0.0
    %676 = vmatprep.subr.mxu0 0.0
    %677 = vmatpush1.msra.mxu0 0.0
    %678 = vmatprep.subr.mxu0 0.0
    %679 = vmatpush1.msra.mxu0 0.0
    %680 = vmatprep.mubr.f32.mxu0 0.0
    %681 = vmatmul.mubr.f32.gmra.mrb[0].mxu0 %v577
    %v682 = vpop.f32.mrb[0].mxu0
    %v683 = vadd.f32 %v614, %v682
    %v684 = vpop.f32.mrb[0].mxu0
    %685 = vmatprep.mubr.f32.mxu0 0.0
    %686 = vmatmul.mubr.f32.gmra.mrb[0].mxu0 %v578
    %v687 = vpop.f32.mrb[0].mxu0
    %v688 = vadd.f32 %v614, %v687
    %v689 = vpop.f32.mrb[0].mxu0
    %690 = vmatprep.mubr.f32.mxu0 0.0
    %691 = vmatmul.mubr.f32.gmra.mrb[0].mxu0 %v579
    %v692 = vpop.f32.mrb[0].mxu0
    %v693 = vadd.f32 %v614, %v692
    %v694 = vpop.f32.mrb[0].mxu0
    %695 = vmatprep.mubr.f32.mxu0 0.0
    %696 = vmatmul.mubr.f32.gmra.mrb[0].mxu0 %v580
    %v697 = vpop.f32.mrb[0].mxu0
    %v698 = vadd.f32 %v614, %v697
    %v699 = vpop.f32.mrb[0].mxu0
    %700 = vmatprep.mubr.f32.mxu0 0.0
    %701 = vmatmul.mubr.f32.gmra.mrb[0].mxu0 %v581
    %v702 = vpop.f32.mrb[0].mxu0
    %v703 = vadd.f32 %v614, %v702
    %v704 = vpop.f32.mrb[0].mxu0
    %705 = vmatprep.mubr.f32.mxu0 0.0
    %706 = vmatmul.mubr.f32.gmra.mrb[0].mxu0 %v582
    %v707 = vpop.f32.mrb[0].mxu0
    %v708 = vadd.f32 %v614, %v707
    %v709 = vpop.f32.mrb[0].mxu0
    %710 = vmatprep.mubr.f32.mxu0 0.0
    %711 = vmatmul.mubr.f32.gmra.mrb[0].mxu0 %v583
    %v712 = vpop.f32.mrb[0].mxu0
    %v713 = vadd.f32 %v614, %v712
    %v714 = vpop.f32.mrb[0].mxu0
    %715 = vmatprep.mubr.f32.mxu0 0.0
    %716 = vmatmul.mubr.f32.gmra.mrb[0].mxu0 %v584
    %v717 = vpop.f32.mrb[0].mxu0
    %v718 = vadd.f32 %v614, %v717
    %v719 = vpop.f32.mrb[0].mxu0
    %720 = vmatprep.mubr.f32.mxu0 0.0
    %721 = vmatmul.mubr.f32.gmra.mrb[0].mxu0 %v585
    %v722 = vpop.f32.mrb[0].mxu0
    %v723 = vadd.f32 %v614, %v722
    %v724 = vpop.f32.mrb[0].mxu0
    %725 = vmatprep.mubr.f32.mxu0 0.0
    %726 = vmatmul.mubr.f32.gmra.mrb[0].mxu0 %v586
    %v727 = vpop.f32.mrb[0].mxu0
    %v728 = vadd.f32 %v614, %v727
    %v729 = vpop.f32.mrb[0].mxu0
    %730 = vmatprep.mubr.f32.mxu0 0.0
    %731 = vmatmul.mubr.f32.gmra.mrb[0].mxu0 %v587
    %v732 = vpop.f32.mrb[0].mxu0
    %v733 = vadd.f32 %v614, %v732
    %v734 = vpop.f32.mrb[0].mxu0
    %735 = vmatprep.mubr.f32.mxu0 0.0
    %736 = vmatmul.mubr.f32.gmra.mrb[0].mxu0 %v588
    %v737 = vpop.f32.mrb[0].mxu0
    %v738 = vadd.f32 %v614, %v737
    %v739 = vpop.f32.mrb[0].mxu0
    %740 = vmatprep.mubr.f32.mxu0 0.0
    %741 = vmatmul.mubr.f32.gmra.mrb[0].mxu0 %v589
    %v742 = vpop.f32.mrb[0].mxu0
    %v743 = vadd.f32 %v614, %v742
    %v744 = vpop.f32.mrb[0].mxu0
    %745 = vmatprep.mubr.f32.mxu0 0.0
    %746 = vmatmul.mubr.f32.gmra.mrb[0].mxu0 %v590
    %v747 = vpop.f32.mrb[0].mxu0
    %v748 = vadd.f32 %v614, %v747
    %v749 = vpop.f32.mrb[0].mxu0
    %750 = vmatprep.mubr.f32.mxu0 0.0
    %751 = vmatmul.mubr.f32.gmra.mrb[0].mxu0 %v591
    %v752 = vpop.f32.mrb[0].mxu0
    %v753 = vadd.f32 %v614, %v752
    %v754 = vpop.f32.mrb[0].mxu0
    %755 = vmatprep.mubr.f32.mxu0 0.0
    %756 = vmatmul.mubr.f32.gmra.mrb[0].mxu0 %v592
    %v757 = vpop.f32.mrb[0].mxu0
    %v758 = vadd.f32 %v614, %v757
    %v759 = vpop.f32.mrb[0].mxu0
    %760 = vdwg.mxu0
    %vm761 = vcmp.gt.f32.partialorder %v683, 0.0
    %vm762 = vcmp.gt.f32.partialorder %v688, 0.0
    %vm763 = vcmp.gt.f32.partialorder %v693, 0.0
    %vm764 = vcmp.gt.f32.partialorder %v698, 0.0
    %vm765 = vcmp.gt.f32.partialorder %v703, 0.0
    %vm766 = vcmp.gt.f32.partialorder %v708, 0.0
    %vm767 = vcmp.gt.f32.partialorder %v713, 0.0
    %vm768 = vcmp.gt.f32.partialorder %v718, 0.0
    %vm769 = vcmp.gt.f32.partialorder %v723, 0.0
    %vm770 = vcmp.gt.f32.partialorder %v728, 0.0
    %vm771 = vcmp.gt.f32.partialorder %v733, 0.0
    %vm772 = vcmp.gt.f32.partialorder %v738, 0.0
    %vm773 = vcmp.gt.f32.partialorder %v743, 0.0
    %vm774 = vcmp.gt.f32.partialorder %v748, 0.0
    %vm775 = vcmp.gt.f32.partialorder %v753, 0.0
    %vm776 = vcmp.gt.f32.partialorder %v758, 0.0
    %v777 = vmul.f32 %v683, 1.442695
    %v778 = vpow.pop %v777
    %v779 = vmul.f32 %v688, 1.442695
    %v780 = vpow.pop %v779
    %v781 = vmul.f32 %v693, 1.442695
    %v782 = vpow.pop %v781
    %v783 = vmul.f32 %v698, 1.442695
    %v784 = vpow.pop %v783
    %v785 = vmul.f32 %v703, 1.442695
    %v786 = vpow.pop %v785
    %v787 = vmul.f32 %v708, 1.442695
    %v788 = vpow.pop %v787
    %v789 = vmul.f32 %v713, 1.442695
    %v790 = vpow.pop %v789
    %v791 = vmul.f32 %v718, 1.442695
    %v792 = vpow.pop %v791
    %v793 = vmul.f32 %v723, 1.442695
    %v794 = vpow.pop %v793
    %v795 = vmul.f32 %v728, 1.442695
    %v796 = vpow.pop %v795
    %v797 = vmul.f32 %v733, 1.442695
    %v798 = vpow.pop %v797
    %v799 = vmul.f32 %v738, 1.442695
    %v800 = vpow.pop %v799
    %v801 = vmul.f32 %v743, 1.442695
    %v802 = vpow.pop %v801
    %v803 = vmul.f32 %v748, 1.442695
    %v804 = vpow.pop %v803
    %v805 = vmul.f32 %v753, 1.442695
    %v806 = vpow.pop %v805
    %v807 = vmul.f32 %v758, 1.442695
    %v808 = vpow.pop %v807
    %v809 = vsub.f32 %v778, 1.0
    %v810 = vsub.f32 %v780, 1.0
    %v811 = vsub.f32 %v782, 1.0
    %v812 = vsub.f32 %v784, 1.0
    %v813 = vsub.f32 %v786, 1.0
    %v814 = vsub.f32 %v788, 1.0
    %v815 = vsub.f32 %v790, 1.0
    %v816 = vsub.f32 %v792, 1.0
    %v817 = vsub.f32 %v794, 1.0
    %v818 = vsub.f32 %v796, 1.0
    %v819 = vsub.f32 %v798, 1.0
    %v820 = vsub.f32 %v800, 1.0
    %v821 = vsub.f32 %v802, 1.0
    %v822 = vsub.f32 %v804, 1.0
    %v823 = vsub.f32 %v806, 1.0
    %v824 = vsub.f32 %v808, 1.0
    %v825 = vmul.f32 %v809, 1.6732632
    %v826 = vmul.f32 %v810, 1.6732632
    %v827 = vmul.f32 %v811, 1.6732632
    %v828 = vmul.f32 %v812, 1.6732632
    %v829 = vmul.f32 %v813, 1.6732632
    %v830 = vmul.f32 %v814, 1.6732632
    %v831 = vmul.f32 %v815, 1.6732632
    %v832 = vmul.f32 %v816, 1.6732632
    %v833 = vmul.f32 %v817, 1.6732632
    %v834 = vmul.f32 %v818, 1.6732632
    %v835 = vmul.f32 %v819, 1.6732632
    %v836 = vmul.f32 %v820, 1.6732632
    %v837 = vmul.f32 %v821, 1.6732632
    %v838 = vmul.f32 %v822, 1.6732632
    %v839 = vmul.f32 %v823, 1.6732632
    %v840 = vmul.f32 %v824, 1.6732632
    %v841 = vsel %vm761, %v683, %v825
    %v842 = vsel %vm762, %v688, %v826
    %v843 = vsel %vm763, %v693, %v827
    %v844 = vsel %vm764, %v698, %v828
    %v845 = vsel %vm765, %v703, %v829
    %v846 = vsel %vm766, %v708, %v830
    %v847 = vsel %vm767, %v713, %v831
    %v848 = vsel %vm768, %v718, %v832
    %v849 = vsel %vm769, %v723, %v833
    %v850 = vsel %vm770, %v728, %v834
    %v851 = vsel %vm771, %v733, %v835
    %v852 = vsel %vm772, %v738, %v836
    %v853 = vsel %vm773, %v743, %v837
    %v854 = vsel %vm774, %v748, %v838
    %v855 = vsel %vm775, %v753, %v839
    %v856 = vsel %vm776, %v758, %v840
    %v857 = vmul.f32 %v841, 1.050701
    %v858 = vmul.f32 %v842, 1.050701
    %v859 = vmul.f32 %v843, 1.050701
    %v860 = vmul.f32 %v844, 1.050701
    %v861 = vmul.f32 %v845, 1.050701
    %v862 = vmul.f32 %v846, 1.050701
    %v863 = vmul.f32 %v847, 1.050701
    %v864 = vmul.f32 %v848, 1.050701
    %v865 = vmul.f32 %v849, 1.050701
    %v866 = vmul.f32 %v850, 1.050701
    %v867 = vmul.f32 %v851, 1.050701
    %v868 = vmul.f32 %v852, 1.050701
    %v869 = vmul.f32 %v853, 1.050701
    %v870 = vmul.f32 %v854, 1.050701
    %v871 = vmul.f32 %v855, 1.050701
    %v872 = vmul.f32 %v856, 1.050701
    %v873 = vld [vmem:[%s7] sm:$0x1]
    %v875 = vlaneseq
    %v876 = vshrl.u32 %v875, 7
    %v877 = vsub.s32 0, %v876
    %v878 = vrot.slane %v873, %v877
    %v880 = vmul.f32 %v857, %v878
    %v881 = vmul.f32 %v858, %v878
    %v882 = vmul.f32 %v859, %v878
    %v883 = vmul.f32 %v860, %v878
    %v884 = vmul.f32 %v861, %v878
    %v885 = vmul.f32 %v862, %v878
    %v886 = vmul.f32 %v863, %v878
    %v887 = vmul.f32 %v864, %v878
    %v888 = vmul.f32 %v865, %v878
    %v889 = vmul.f32 %v866, %v878
    %v890 = vmul.f32 %v867, %v878
    %v891 = vmul.f32 %v868, %v878
    %v892 = vmul.f32 %v869, %v878
    %v893 = vmul.f32 %v870, %v878
    %v894 = vmul.f32 %v871, %v878
    %v895 = vmul.f32 %v872, %v878
    %896 = vadd.xlane.f32.xlu0 %v880
    %v897 = vpop.xlane.xlu0 %896
    %898 = vadd.xlane.f32.xlu0 %v881
    %v899 = vpop.xlane.xlu0 %898
    %900 = vadd.xlane.f32.xlu0 %v882
    %v901 = vpop.xlane.xlu0 %900
    %902 = vadd.xlane.f32.xlu0 %v883
    %v903 = vpop.xlane.xlu0 %902
    %904 = vadd.xlane.f32.xlu0 %v884
    %v905 = vpop.xlane.xlu0 %904
    %906 = vadd.xlane.f32.xlu0 %v885
    %v907 = vpop.xlane.xlu0 %906
    %908 = vadd.xlane.f32.xlu0 %v886
    %v909 = vpop.xlane.xlu0 %908
    %910 = vadd.xlane.f32.xlu0 %v887
    %v911 = vpop.xlane.xlu0 %910
    %912 = vadd.xlane.f32.xlu0 %v888
    %v913 = vpop.xlane.xlu0 %912
    %914 = vadd.xlane.f32.xlu0 %v889
    %v915 = vpop.xlane.xlu0 %914
    %916 = vadd.xlane.f32.xlu0 %v890
    %v917 = vpop.xlane.xlu0 %916
    %918 = vadd.xlane.f32.xlu0 %v891
    %v919 = vpop.xlane.xlu0 %918
    %920 = vadd.xlane.f32.xlu0 %v892
    %v921 = vpop.xlane.xlu0 %920
    %922 = vadd.xlane.f32.xlu0 %v893
    %v923 = vpop.xlane.xlu0 %922
    %924 = vadd.xlane.f32.xlu0 %v894
    %v925 = vpop.xlane.xlu0 %924
    %926 = vadd.xlane.f32.xlu0 %v895
    %v927 = vpop.xlane.xlu0 %926
    %s928 = sld [smem:[#allocation2]]
    %v929 = vstv %s928
    %v930 = vadd.f32 %v897, %v929
    %v931 = vadd.f32 %v899, %v929
    %v932 = vadd.f32 %v901, %v929
    %v933 = vadd.f32 %v903, %v929
    %v934 = vadd.f32 %v905, %v929
    %v935 = vadd.f32 %v907, %v929
    %v936 = vadd.f32 %v909, %v929
    %v937 = vadd.f32 %v911, %v929
    %v938 = vadd.f32 %v913, %v929
    %v939 = vadd.f32 %v915, %v929
    %v940 = vadd.f32 %v917, %v929
    %v941 = vadd.f32 %v919, %v929
    %v942 = vadd.f32 %v921, %v929
    %v943 = vadd.f32 %v923, %v929
    %v944 = vadd.f32 %v925, %v929
    %v945 = vadd.f32 %v927, %v929
    %v946 = vlaneseq
    %v947 = vshrl.u32 %v946, 7
    %v948 = vadd.s32 %v947, 8
    %v949 = vadd.s32 %v947, 16
    %v950 = vadd.s32 %v947, 24
    %v951 = vadd.s32 %v947, 32
    %v952 = vadd.s32 %v947, 40
    %v953 = vadd.s32 %v947, 48
    %v954 = vadd.s32 %v947, 56
    %v955 = vadd.s32 %v947, 64
    %v956 = vadd.s32 %v947, 72
    %v957 = vadd.s32 %v947, 80
    %v958 = vadd.s32 %v947, 88
    %v959 = vadd.s32 %v947, 96
    %v960 = vadd.s32 %v947, 104
    %v961 = vadd.s32 %v947, 112
    %v962 = vadd.s32 %v947, 120
    %v963 = vlaneseq
    %v964 = vand.u32 %v963, 127
    %vm965 = vcmp.eq.s32.totalorder %v947, %v964
    %vm966 = vcmp.eq.s32.totalorder %v948, %v964
    %vm967 = vcmp.eq.s32.totalorder %v949, %v964
    %vm968 = vcmp.eq.s32.totalorder %v950, %v964
    %vm969 = vcmp.eq.s32.totalorder %v951, %v964
    %vm970 = vcmp.eq.s32.totalorder %v952, %v964
    %vm971 = vcmp.eq.s32.totalorder %v953, %v964
    %vm972 = vcmp.eq.s32.totalorder %v954, %v964
    %vm973 = vcmp.eq.s32.totalorder %v955, %v964
    %vm974 = vcmp.eq.s32.totalorder %v956, %v964
    %vm975 = vcmp.eq.s32.totalorder %v957, %v964
    %vm976 = vcmp.eq.s32.totalorder %v958, %v964
    %vm977 = vcmp.eq.s32.totalorder %v959, %v964
    %vm978 = vcmp.eq.s32.totalorder %v960, %v964
    %vm979 = vcmp.eq.s32.totalorder %v961, %v964
    %vm980 = vcmp.eq.s32.totalorder %v962, %v964
    %v981 = vsel %vm965, 1, 0
    %v982 = vsel %vm966, 1, 0
    %v983 = vsel %vm967, 1, 0
    %v984 = vsel %vm968, 1, 0
    %v985 = vsel %vm969, 1, 0
    %v986 = vsel %vm970, 1, 0
    %v987 = vsel %vm971, 1, 0
    %v988 = vsel %vm972, 1, 0
    %v989 = vsel %vm973, 1, 0
    %v990 = vsel %vm974, 1, 0
    %v991 = vsel %vm975, 1, 0
    %v992 = vsel %vm976, 1, 0
    %v993 = vsel %vm977, 1, 0
    %v994 = vsel %vm978, 1, 0
    %v995 = vsel %vm979, 1, 0
    %v996 = vsel %vm980, 1, 0
    %v997 = vcvt.s32.f32 %v981
    %v998 = vcvt.s32.f32 %v982
    %v999 = vcvt.s32.f32 %v983
    %v1000 = vcvt.s32.f32 %v984
    %v1001 = vcvt.s32.f32 %v985
    %v1002 = vcvt.s32.f32 %v986
    %v1003 = vcvt.s32.f32 %v987
    %v1004 = vcvt.s32.f32 %v988
    %v1005 = vcvt.s32.f32 %v989
    %v1006 = vcvt.s32.f32 %v990
    %v1007 = vcvt.s32.f32 %v991
    %v1008 = vcvt.s32.f32 %v992
    %v1009 = vcvt.s32.f32 %v993
    %v1010 = vcvt.s32.f32 %v994
    %v1011 = vcvt.s32.f32 %v995
    %v1012 = vcvt.s32.f32 %v996
    %v1013 = vmul.f32 %v930, %v997
    %v1014 = vmul.f32 %v931, %v998
    %v1015 = vmul.f32 %v932, %v999
    %v1016 = vmul.f32 %v933, %v1000
    %v1017 = vmul.f32 %v934, %v1001
    %v1018 = vmul.f32 %v935, %v1002
    %v1019 = vmul.f32 %v936, %v1003
    %v1020 = vmul.f32 %v937, %v1004
    %v1021 = vmul.f32 %v938, %v1005
    %v1022 = vmul.f32 %v939, %v1006
    %v1023 = vmul.f32 %v940, %v1007
    %v1024 = vmul.f32 %v941, %v1008
    %v1025 = vmul.f32 %v942, %v1009
    %v1026 = vmul.f32 %v943, %v1010
    %v1027 = vmul.f32 %v944, %v1011
    %v1028 = vmul.f32 %v945, %v1012
    %v1029 = vadd.f32 %v1013, %v1014
    %v1030 = vadd.f32 %v1029, %v1015
    %v1031 = vadd.f32 %v1030, %v1016
    %v1032 = vadd.f32 %v1031, %v1017
    %v1033 = vadd.f32 %v1032, %v1018
    %v1034 = vadd.f32 %v1033, %v1019
    %v1035 = vadd.f32 %v1034, %v1020
    %v1036 = vadd.f32 %v1035, %v1021
    %v1037 = vadd.f32 %v1036, %v1022
    %v1038 = vadd.f32 %v1037, %v1023
    %v1039 = vadd.f32 %v1038, %v1024
    %v1040 = vadd.f32 %v1039, %v1025
    %v1041 = vadd.f32 %v1040, %v1026
    %v1042 = vadd.f32 %v1041, %v1027
    %v1043 = vadd.f32 %v1042, %v1028
    %v1044 = vrot.slane %v1043, 4
    %v1045 = vadd.f32 %v1043, %v1044
    %v1046 = vrot.slane %v1045, 2
    %v1047 = vadd.f32 %v1045, %v1046
    %v1048 = vrot.slane %v1047, 1
    %v1049 = vadd.f32 %v1047, %v1048
    %1050 = vst [vmem:[#allocation3] sm:$0x1] %v1049
    // Predicated region
    $region38: #{tpu_custom_call.1} parent=1 // pred_check
      _
    $region39: #{tpu_custom_call.1} parent=1 // pred_check_branch
      %1052 = sbr.rel (0) target = $region41
    $region40: #{tpu_custom_call.1} parent=1 // pred_region
      %s1054 = ssub.s32 16, 16
      %1055 = vsyncadd [#allocation4], %s1054
      %s1057 = sshll.u32 [#allocation3], 4
      %s1058 = int_to_ptr.vmem [resolvable:$true] %s1057
      %1060 = dma.vmem_to_hbm [thread:$0]  %s1058, 16, %s9, [#allocation4]
    $region41: #{tpu_custom_call.1} parent=1 // pred_fallthru
      _
    // Predicated region
    $region42: #{tpu_custom_call.1} parent=1 // pred_check
      _
    $region43: #{tpu_custom_call.1} parent=1 // pred_check_branch
      %1062 = sbr.rel (0) target = $region45
    $region44: #{tpu_custom_call.1} parent=1 // pred_region
      %1063 = dma.done [#allocation4], 16
    $region45: #{tpu_custom_call.1} parent=1 // pred_fallthru
      _
    %1064 = vsyncpa [#allocation4], 1

</llo_original>
